<compile_context>
chip_gen: v7x
topology: tpu7x:2x2x1
jax: 0.10.0
libtpu: 0.0.40
codegen_flags: <defaults>
</compile_context>

<pallas_src>
import numpy as np
import jax
import jax.numpy as jnp
from jax.experimental import pallas as pl
from jax.experimental.pallas import tpu as pltpu

B_DEF = 2
NUM_VERTS = 256
NUM_JOINTS = 23                 # SMPL body joints (excluding root)
J = NUM_JOINTS + 1              # 24 joints including the root
NUM_BETAS = 10
POSE_FEAT = (J - 1) * 9         # 207
V3 = NUM_VERTS * 3
JPAD = 32                       # joint dim padded 24 -> 32 for aligned loads
KROWS = 1 + NUM_BETAS + POSE_FEAT   # 218 rows: [v_template | shapedirs | posedirs]
KPAD = 224                      # contraction dim padded to a multiple of 16 (bf16 tile)


# ----------------------------- Pallas kernel ------------------------------

def _fused_lbs_kernel(feat_ref, dirs_ref, r_ref, wt_ref, verts_ref):
    """Fused blend-shapes + LBS skinning, fully vectorized.

    feat_ref  : (BP, KPAD)     bf16  [1 | betas | pose_feat | 0], replicated so
                                     row r = 3*b + c (all c share batch b), BP = pad8(B*3)
    dirs_ref  : (KPAD, 3V)     bf16  [v_template ; shapedirs ; posedirs ; 0], planar [c*V+v]
    r_ref     : (4*BP, JPAD)   f32   relative transforms, row = k*BP + 3*b + c
    wt_ref    : (JPAD, V)      f32   lbs_weights^T, joint dim zero-padded
    verts_ref : (BP, V)        f32   output, row = 3*b + c  (unmasked 8-sublane store)
    """
    bp = feat_ref.shape[0]
    nv = wt_ref.shape[1]

    # one MXU pass: v_template + shape blendshapes + pose blendshapes, (BP, 3V)
    v_posed = jnp.dot(feat_ref[...], dirs_ref[...],
                      preferred_element_type=jnp.float32)

    # blended per-vertex transform rows, V on lanes: (4*BP, JPAD) x (JPAD, V)
    t_rows = jnp.dot(r_ref[...], wt_ref[...],
                     preferred_element_type=jnp.float32)

    # full-vreg skinning epilogue: verts = T0*X + T1*Y + T2*Z + T3
    verts_ref[...] = (t_rows[0 * bp:1 * bp, :] * v_posed[:, 0 * nv:1 * nv]
                      + t_rows[1 * bp:2 * bp, :] * v_posed[:, 1 * nv:2 * nv]
                      + t_rows[2 * bp:3 * bp, :] * v_posed[:, 2 * nv:3 * nv]
                      + t_rows[3 * bp:4 * bp, :])


def _fused_lbs_call(feat_rep, dirs_bf16, r_all, wt_pad, bp):
    vspec = pl.BlockSpec(memory_space=pltpu.MemorySpace.VMEM)
    return pl.pallas_call(
        _fused_lbs_kernel,
        out_shape=jax.ShapeDtypeStruct((bp, NUM_VERTS), jnp.float32),
        in_specs=[vspec] * 4,
        out_specs=vspec,
    )(feat_rep, dirs_bf16, r_all, wt_pad)


# ------------------------------ JAX glue ----------------------------------

def batch_rodrigues(rot_vecs):
    """Axis-angle (N,3) -> rotation matrices (N,3,3), matching smplx."""
    angle = jnp.linalg.norm(rot_vecs + 1e-8, axis=1, keepdims=True)   # (N,1)
    rot_dir = rot_vecs / angle
    cos = jnp.cos(angle)[:, None]                                     # (N,1,1)
    sin = jnp.sin(angle)[:, None]
    rx, ry, rz = rot_dir[:, 0], rot_dir[:, 1], rot_dir[:, 2]
    zeros = jnp.zeros_like(rx)
    K = jnp.stack([zeros, -rz, ry,
                   rz, zeros, -rx,
                   -ry, rx, zeros], axis=1).reshape(-1, 3, 3)
    ident = jnp.eye(3, dtype=rot_vecs.dtype)[None]
    return ident + sin * K + (1.0 - cos) * jnp.matmul(K, K)


def transform_mat(R, t):
    """R: (N,3,3), t: (N,3,1) -> (N,4,4), same as the torch transform_mat."""
    Rp = jnp.concatenate([R, jnp.zeros(R.shape[:-2] + (1, 3), R.dtype)], axis=-2)
    tp = jnp.concatenate([t, jnp.ones(t.shape[:-2] + (1, 1), t.dtype)], axis=-2)
    return jnp.concatenate([Rp, tp], axis=-1)


def batch_rigid_transform(rot_mats, joints, parents, levels):
    """rot_mats (B,J,3,3), joints (B,J,3); chain evaluated by tree depth level
    (one batched 4x4 matmul per level instead of J-1 sequential matmuls)."""
    b = rot_mats.shape[0]
    joints_u = joints[..., None]                                   # (B,J,3,1)
    rel_joints = joints_u.at[:, 1:].add(-joints_u[:, parents[1:]])
    tmats = transform_mat(rot_mats.reshape(-1, 3, 3),
                          rel_joints.reshape(-1, 3, 1)).reshape(b, J, 4, 4)

    out = tmats                                                    # root already global
    for lv in levels[1:]:                                          # static numpy index sets
        par = parents[lv]                                          # parents at lower depth
        out = out.at[:, lv].set(jnp.matmul(out[:, par], out[:, lv]))
    transforms = out                                               # (B,J,4,4)

    posed_joints = transforms[:, :, :3, 3]
    joints_hom = jnp.concatenate(
        [joints_u, jnp.zeros((b, J, 1, 1), joints.dtype)], axis=2)  # (B,J,4,1)
    corr = jnp.matmul(transforms, joints_hom)                       # (B,J,4,1)
    rel_transforms = transforms - jnp.concatenate(
        [jnp.zeros((b, J, 4, 3), joints.dtype), corr], axis=-1)
    return posed_joints, rel_transforms


class Struct:
    def __init__(self, **kwargs):
        self.__dict__.update(kwargs)


class BodyModel:
    """JAX/Pallas re-implementation of BodyModel.forward (SMPL-style LBS).
    Parameters are deterministic synthetic stand-ins for the .pkl assets."""

    def __init__(self, num_betas=NUM_BETAS, seed=42):
        key = jax.random.PRNGKey(seed)
        ks = jax.random.split(key, 6)
        self.num_joints = NUM_JOINTS
        self.model_type = 'smpl'
        self.use_vtx_selector = False

        v_template = 0.5 * jax.random.normal(ks[0], (NUM_VERTS, 3), jnp.float32)
        shapedirs = 0.03 * jax.random.normal(
            ks[1], (NUM_VERTS, 3, num_betas), jnp.float32)
        posedirs = 0.01 * jax.random.normal(
            ks[2], (POSE_FEAT, NUM_VERTS, 3), jnp.float32)
        jr = jax.random.uniform(ks[3], (J, NUM_VERTS), jnp.float32)
        j_regressor = jr / jnp.sum(jr, axis=1, keepdims=True)
        w = jax.random.uniform(ks[4], (NUM_VERTS, J), jnp.float32)
        lbs_weights = w / jnp.sum(w, axis=1, keepdims=True)
        # synthetic kinematic tree: root=-1, rest forms a shallow binary tree
        self.parents = np.concatenate(
            [np.array([-1], np.int32),
             np.maximum(0, (np.arange(1, J) - 1) // 2).astype(np.int32)])
        self.faces_tensor = jax.random.randint(
            ks[5], (NUM_VERTS, 3), 0, NUM_VERTS, jnp.int32)

        # tree depth levels (for the level-parallel kinematic chain)
        depth = np.zeros(J, np.int32)
        for i in range(1, J):
            depth[i] = depth[self.parents[i]] + 1
        self.levels = [np.where(depth == d)[0] for d in range(int(depth.max()) + 1)]

        # canonical parameters (also used by the pure-JAX reference check)
        self.v_template = v_template
        self.shapedirs = shapedirs
        self.posedirs = posedirs
        self.J_regressor = j_regressor
        self.lbs_weights = lbs_weights

        # ---- precomputed kernel-friendly layouts (init-time only) ----
        # planar vertex layout: flat column index = c * V + v   (c in {x,y,z})
        vt_row = v_template.T.reshape(1, V3)                               # (1, 3V)
        sd_rows = jnp.transpose(shapedirs, (2, 1, 0)).reshape(num_betas, V3)
        pd_rows = jnp.transpose(posedirs, (0, 2, 1)).reshape(POSE_FEAT, V3)
        dirs = jnp.concatenate([vt_row, sd_rows, pd_rows], axis=0)         # (218, 3V)
        dirs = jnp.pad(dirs, ((0, KPAD - KROWS), (0, 0)))                  # (224, 3V)
        # bf16 MXU-operand storage (f32 accumulation in-kernel); loosens vertex
        # accuracy to ~1e-2 -- fine here, flag if f32-level SMPL verts needed.
        self.dirs_bf16 = dirs.astype(jnp.bfloat16)

        # joints depend linearly on betas -> fold J_regressor into tiny tables
        self.j_template = j_regressor @ v_template                         # (J,3)
        self.j_shapedirs = jnp.einsum('jv,vcl->ljc', j_regressor,
                                      shapedirs)                           # (NB,J,3)
        # padded, transposed skinning weights (joint dim 24 -> 32, V on lanes)
        self.wt_pad = jnp.pad(lbs_weights, ((0, 0), (0, JPAD - J))).T      # (JPAD,V)

    def forward(self, root_orient=None, pose_body=None, pose_hand=None,
                betas=None, trans=None, dmpls=None, return_dict=False, **kwargs):
        assert dmpls is None
        bsz = betas.shape[0]
        bp = ((bsz * 3 + 7) // 8) * 8                       # output rows padded to 8 sublanes
        if root_orient is None:
            root_orient = jnp.zeros((bsz, 3), jnp.float32)
        if pose_body is None:
            pose_body = jnp.zeros((bsz, NUM_JOINTS * 3), jnp.float32)
        if trans is None:
            trans = jnp.zeros((bsz, 3), jnp.float32)

        full_pose = jnp.concatenate([root_orient, pose_body], axis=1)  # (B, J*3)
        rot_mats = batch_rodrigues(full_pose.reshape(-1, 3)).reshape(bsz, J, 3, 3)
        ident = jnp.eye(3, dtype=jnp.float32)
        pose_feature = (rot_mats[:, 1:] - ident).reshape(bsz, POSE_FEAT)

        # tiny: joints are linear in betas (J_regressor folded at init)
        joints = self.j_template[None] + jnp.einsum(
            'bl,ljc->bjc', betas, self.j_shapedirs)                    # (B,J,3)

        # kinematic chain, evaluated level-by-level (4 batched 4x4 matmuls)
        posed_joints, rel_transforms = batch_rigid_transform(
            rot_mats, joints, self.parents, self.levels)

        # fused blend feature [1 | betas | pose_feature | 0], replicated to the
        # padded output-row layout (row = 3*b + c) so the kernel epilogue is
        # pure full-vreg FMAs.
        feat = jnp.concatenate(
            [jnp.ones((bsz, 1), jnp.float32), betas, pose_feature], axis=1)
        feat = jnp.pad(feat, ((0, 0), (0, KPAD - KROWS)))              # (B, KPAD)
        feat_rep = jnp.repeat(feat, 3, axis=0)                         # (B*3, KPAD)
        feat_rep = jnp.pad(feat_rep, ((0, bp - bsz * 3), (0, 0))
                           ).astype(jnp.bfloat16)                      # (BP, KPAD)

        # pack relative transforms k-major: row = k*BP + 3*b + c
        a34 = rel_transforms[:, :, :3, :]                              # (B,J,3,4)
        r_all = jnp.transpose(a34, (3, 0, 2, 1)).reshape(4, bsz * 3, J)
        r_all = jnp.pad(r_all, ((0, 0), (0, bp - bsz * 3), (0, JPAD - J)))
        r_all = r_all.reshape(4 * bp, JPAD)                            # (4*BP, JPAD)

        # single Pallas launch: blend-shapes + pose blend-shapes + skinning
        verts_planar = _fused_lbs_call(
            feat_rep, self.dirs_bf16, r_all, self.wt_pad, bp)          # (BP, V)
        verts = jnp.transpose(
            verts_planar[:bsz * 3].reshape(bsz, 3, NUM_VERTS),
            (0, 2, 1)) + trans[:, None, :]                             # (B, V, 3)
        jtr = posed_joints + trans[:, None, :]

        out = {'v': verts, 'f': self.faces_tensor, 'betas': betas,
               'Jtr': jtr, 'pose_body': pose_body, 'full_pose': full_pose}
        if not self.use_vtx_selector:
            out['Jtr'] = out['Jtr'][:, :self.num_joints + 1]
        if not return_dict:
            out = Struct(**out)
        return out


# --------------------- pure-JAX reference (for sanity) ---------------------

def _reference_forward(model, root_orient, pose_body, betas, trans):
    bsz = betas.shape[0]
    full_pose = jnp.concatenate([root_orient, pose_body], axis=1)
    rot_mats = batch_rodrigues(full_pose.reshape(-1, 3)).reshape(bsz, J, 3, 3)
    pose_feature = (rot_mats[:, 1:] - jnp.eye(3, dtype=jnp.float32)
                    ).reshape(bsz, POSE_FEAT)
    v_shaped = model.v_template[None] + jnp.einsum(
        'bl,vcl->bvc', betas, model.shapedirs)
    joints = jnp.einsum('jv,bvc->bjc', model.J_regressor, v_shaped)
    v_posed = v_shaped + jnp.einsum('bp,pvc->bvc', pose_feature, model.posedirs)
    posed_joints, rel = batch_rigid_transform(
        rot_mats, joints, model.parents, model.levels)
    T = jnp.einsum('vj,bjrc->bvrc', model.lbs_weights, rel)           # (B,V,4,4)
    homo = jnp.concatenate(
        [v_posed, jnp.ones((bsz, NUM_VERTS, 1), jnp.float32)], axis=-1)
    verts = jnp.einsum('bvrc,bvc->bvr', T, homo)[..., :3] + trans[:, None, :]
    jtr = posed_joints + trans[:, None, :]
    return verts, jtr


if __name__ == "__main__":
    key = jax.random.PRNGKey(0)
    k1, k2, k3, k4 = jax.random.split(key, 4)
    root_orient = 0.3 * jax.random.normal(k1, (B_DEF, 3), jnp.float32)
    pose_body = 0.2 * jax.random.normal(k2, (B_DEF, NUM_JOINTS * 3), jnp.float32)
    betas = jax.random.normal(k3, (B_DEF, NUM_BETAS), jnp.float32)
    trans = 0.1 * jax.random.normal(k4, (B_DEF, 3), jnp.float32)

    model = BodyModel()

    @jax.jit
    def run(ro, pb, be, tr):
        return model.forward(root_orient=ro, pose_body=pb, betas=be,
                             trans=tr, return_dict=True)

    out = run(root_orient, pose_body, betas, trans)
    jax.block_until_ready(out['v'])
    jax.block_until_ready(out['Jtr'])

    assert out['v'].shape == (B_DEF, NUM_VERTS, 3)
    assert out['Jtr'].shape == (B_DEF, NUM_JOINTS + 1, 3)
    assert out['full_pose'].shape == (B_DEF, J * 3)
    assert bool(jnp.all(jnp.isfinite(out['v'])))

    # sanity check the fused/planar/bf16 path against a dense f32 reference
    # (bf16 dirs + bf16 v_template row -> ~1e-2 level vertex accuracy)
    v_ref, jtr_ref = _reference_forward(model, root_orient, pose_body, betas, trans)
    assert float(jnp.max(jnp.abs(out['v'] - v_ref))) < 3e-2
    assert float(jnp.max(jnp.abs(out['Jtr'] - jtr_ref[:, :NUM_JOINTS + 1]))) < 5e-3

    print("KERNEL_OK")
</pallas_src>

<mosaic_0001>
module attributes {stable_mosaic.version = 11 : i64} {
  func.func @_fused_lbs_kernel(%arg0: memref<8x224xbf16, #tpu.memory_space<vmem>>, %arg1: memref<224x768xbf16, #tpu.memory_space<vmem>>, %arg2: memref<32x32xf32, #tpu.memory_space<vmem>>, %arg3: memref<32x256xf32, #tpu.memory_space<vmem>>, %arg4: memref<8x256xf32, #tpu.memory_space<vmem>>) attributes {dimension_semantics = [], scalar_prefetch = 0 : i64, scratch_operands = 0 : i64, tpu.core_type = #tpu.core_type<tc>} {
    %c0 = arith.constant 0 : index
    %c0_0 = arith.constant 0 : index
    %0 = vector.load %arg0[%c0, %c0_0] : memref<8x224xbf16, #tpu.memory_space<vmem>>, vector<8x224xbf16>
    %c0_1 = arith.constant 0 : index
    %c0_2 = arith.constant 0 : index
    %1 = vector.load %arg1[%c0_1, %c0_2] : memref<224x768xbf16, #tpu.memory_space<vmem>>, vector<224x768xbf16>
    %cst = arith.constant dense<0.000000e+00> : vector<8x768xf32>
    %2 = tpu.matmul %0, %1, %cst {dimension_numbers = #tpu.dot_dimension_numbers<[1], [0], [0], [1], [0, 0, 1, 1], [], []>} : vector<8x224xbf16>, vector<224x768xbf16>, vector<8x768xf32> -> vector<8x768xf32>
    %c0_3 = arith.constant 0 : index
    %c0_4 = arith.constant 0 : index
    %3 = vector.load %arg2[%c0_3, %c0_4] : memref<32x32xf32, #tpu.memory_space<vmem>>, vector<32x32xf32>
    %c0_5 = arith.constant 0 : index
    %c0_6 = arith.constant 0 : index
    %4 = vector.load %arg3[%c0_5, %c0_6] : memref<32x256xf32, #tpu.memory_space<vmem>>, vector<32x256xf32>
    %cst_7 = arith.constant dense<0.000000e+00> : vector<32x256xf32>
    %5 = tpu.matmul %3, %4, %cst_7 {dimension_numbers = #tpu.dot_dimension_numbers<[1], [0], [0], [1], [0, 0, 1, 1], [], []>} : vector<32x32xf32>, vector<32x256xf32>, vector<32x256xf32> -> vector<32x256xf32>
    %6 = vector.extract_strided_slice %5 {offsets = [0, 0], sizes = [8, 256], strides = [1, 1]} : vector<32x256xf32> to vector<8x256xf32>
    %7 = vector.extract_strided_slice %2 {offsets = [0, 0], sizes = [8, 256], strides = [1, 1]} : vector<8x768xf32> to vector<8x256xf32>
    %8 = arith.mulf %6, %7 : vector<8x256xf32>
    %9 = vector.extract_strided_slice %5 {offsets = [8, 0], sizes = [8, 256], strides = [1, 1]} : vector<32x256xf32> to vector<8x256xf32>
    %10 = vector.extract_strided_slice %2 {offsets = [0, 256], sizes = [8, 256], strides = [1, 1]} : vector<8x768xf32> to vector<8x256xf32>
    %11 = arith.mulf %9, %10 : vector<8x256xf32>
    %12 = arith.addf %8, %11 : vector<8x256xf32>
    %13 = vector.extract_strided_slice %5 {offsets = [16, 0], sizes = [8, 256], strides = [1, 1]} : vector<32x256xf32> to vector<8x256xf32>
    %14 = vector.extract_strided_slice %2 {offsets = [0, 512], sizes = [8, 256], strides = [1, 1]} : vector<8x768xf32> to vector<8x256xf32>
    %15 = arith.mulf %13, %14 : vector<8x256xf32>
    %16 = arith.addf %12, %15 : vector<8x256xf32>
    %17 = vector.extract_strided_slice %5 {offsets = [24, 0], sizes = [8, 256], strides = [1, 1]} : vector<32x256xf32> to vector<8x256xf32>
    %18 = arith.addf %16, %17 : vector<8x256xf32>
    %c0_8 = arith.constant 0 : index
    %c0_9 = arith.constant 0 : index
    %19 = vector.load %arg4[%c0_8, %c0_9] : memref<8x256xf32, #tpu.memory_space<vmem>>, vector<8x256xf32>
    tpu.vector_store %arg4[%c0_8, %c0_9], %18 {strides = array<i32>} : memref<8x256xf32, #tpu.memory_space<vmem>>, vector<8x256xf32>,
    return
  }
}

</mosaic_0001>

<llo_original>
// kernel: run.1
$region0: #{run.1}
  #allocation0 [shape = 'u32[]', space=smem, size = 0x4, offset = 0x4, fixed_abs, tag = 'smem constant byte address 0x4 - core index']
  #allocation1 [shape = 'u32[144,128]{1,0:T(1,128)}', space=vmem, size = 0x12000, scoped, tag = 'internal scratch']
  %s0 = inlined_call_operand.vmem [shape: bf16[8,224], index: 0, kind: input, shape index: {}]
  %s1 = inlined_call_operand.vmem [shape: bf16[224,768], index: 1, kind: input, shape index: {}]
  %s2 = inlined_call_operand.vmem [shape: f32[32,32], index: 2, kind: input, shape index: {}]
  %s3 = inlined_call_operand.vmem [shape: f32[32,256], index: 3, kind: input, shape index: {}]
  %s4 = inlined_call_operand.vmem [shape: f32[8,256], index: 4, kind: output, shape index: {}]
  %s5 = sld [smem:[#allocation0]]
  $region26: #{run.1} parent=0
    _
  %s7 = ssub.s32 1, %s5
  %s8 = scalar_select 0, %s7, %s5
  // Predicated region
  $region2: #{run.1} parent=0 // pred_check
    _
  $region3: #{run.1} parent=0 // pred_check_branch
    %10 = sbr.rel (0) target = $region5
  $region4: #{run.1} parent=0 // pred_region
    _
  $region5: #{run.1} parent=0 // pred_fallthru
    _
  // Predicated region
  $region6: #{run.1} parent=0 // pred_check
    _
  $region7: #{run.1} parent=0 // pred_check_branch
    %12 = sbr.rel (0) target = $region9
  $region8: #{run.1} parent=0 // pred_region
    _
  $region9: #{run.1} parent=0 // pred_fallthru
    _
  // Predicated region
  $region10: #{run.1} parent=0 // pred_check
    _
  $region11: #{run.1} parent=0 // pred_check_branch
    %14 = sbr.rel (0) target = $region13
  $region12: #{run.1} parent=0 // pred_region
    _
  $region13: #{run.1} parent=0 // pred_fallthru
    _
  // Predicated region
  $region14: #{run.1} parent=0 // pred_check
    _
  $region15: #{run.1} parent=0 // pred_check_branch
    %16 = sbr.rel (0) target = $region17
  $region16: #{run.1} parent=0 // pred_region
    _
  $region17: #{run.1} parent=0 // pred_fallthru
    _
  %v18 = vld [vmem:[%s0] sm:$0xff]
  %v19 = vld [vmem:[%s1] sm:$0xff]
  %v20 = vld [vmem:[%s1 + $0x8] sm:$0xff]
  %v21 = vld [vmem:[%s1 + $0x10] sm:$0xff]
  %v22 = vld [vmem:[%s1 + $0x18] sm:$0xff]
  %v23 = vld [vmem:[%s1 + $0x20] sm:$0xff]
  %v24 = vld [vmem:[%s1 + $0x28] sm:$0xff]
  %v25 = vld [vmem:[%s1 + $0x30] sm:$0xff]
  %v26 = vld [vmem:[%s1 + $0x38] sm:$0xff]
  %v27 = vld [vmem:[%s1 + $0x40] sm:$0xff]
  %v28 = vld [vmem:[%s1 + $0x48] sm:$0xff]
  %v29 = vld [vmem:[%s1 + $0x50] sm:$0xff]
  %v30 = vld [vmem:[%s1 + $0x58] sm:$0xff]
  %v31 = vld [vmem:[%s1 + $0x60] sm:$0xff]
  %v32 = vld [vmem:[%s1 + $0x68] sm:$0xff]
  %v33 = vld [vmem:[%s1 + $0x70] sm:$0xff]
  %v34 = vld [vmem:[%s1 + $0x78] sm:$0xff]
  %v35 = vld [vmem:[%s1 + $0x80] sm:$0xff]
  %v36 = vld [vmem:[%s1 + $0x88] sm:$0xff]
  %v37 = vld [vmem:[%s1 + $0x90] sm:$0xff]
  %v38 = vld [vmem:[%s1 + $0x98] sm:$0xff]
  %v39 = vld [vmem:[%s1 + $0xa0] sm:$0xff]
  %v40 = vld [vmem:[%s1 + $0xa8] sm:$0xff]
  %v41 = vld [vmem:[%s1 + $0xb0] sm:$0xff]
  %v42 = vld [vmem:[%s1 + $0xb8] sm:$0xff]
  %v43 = vld [vmem:[%s1 + $0xc0] sm:$0xff]
  %v44 = vld [vmem:[%s1 + $0xc8] sm:$0xff]
  %v45 = vld [vmem:[%s1 + $0xd0] sm:$0xff]
  %v46 = vld [vmem:[%s1 + $0xd8] sm:$0xff]
  %v47 = vld [vmem:[%s1 + $0xe0] sm:$0xff]
  %v48 = vld [vmem:[%s1 + $0xe8] sm:$0xff]
  %v49 = vld [vmem:[%s1 + $0xf0] sm:$0xff]
  %v50 = vld [vmem:[%s1 + $0xf8] sm:$0xff]
  %v51 = vld [vmem:[%s1 + $0x100] sm:$0xff]
  %v52 = vld [vmem:[%s1 + $0x108] sm:$0xff]
  %v53 = vld [vmem:[%s1 + $0x110] sm:$0xff]
  %v54 = vld [vmem:[%s1 + $0x118] sm:$0xff]
  %v55 = vld [vmem:[%s1 + $0x120] sm:$0xff]
  %v56 = vld [vmem:[%s1 + $0x128] sm:$0xff]
  %v57 = vld [vmem:[%s1 + $0x130] sm:$0xff]
  %v58 = vld [vmem:[%s1 + $0x138] sm:$0xff]
  %v59 = vld [vmem:[%s1 + $0x140] sm:$0xff]
  %v60 = vld [vmem:[%s1 + $0x148] sm:$0xff]
  %v61 = vld [vmem:[%s1 + $0x150] sm:$0xff]
  %v62 = vld [vmem:[%s1 + $0x158] sm:$0xff]
  %v63 = vld [vmem:[%s1 + $0x160] sm:$0xff]
  %v64 = vld [vmem:[%s1 + $0x168] sm:$0xff]
  %v65 = vld [vmem:[%s1 + $0x170] sm:$0xff]
  %v66 = vld [vmem:[%s1 + $0x178] sm:$0xff]
  %v67 = vld [vmem:[%s1 + $0x180] sm:$0xff]
  %v68 = vld [vmem:[%s1 + $0x188] sm:$0xff]
  %v69 = vld [vmem:[%s1 + $0x190] sm:$0xff]
  %v70 = vld [vmem:[%s1 + $0x198] sm:$0xff]
  %v71 = vld [vmem:[%s1 + $0x1a0] sm:$0xff]
  %v72 = vld [vmem:[%s1 + $0x1a8] sm:$0xff]
  %v73 = vld [vmem:[%s1 + $0x1b0] sm:$0xff]
  %v74 = vld [vmem:[%s1 + $0x1b8] sm:$0xff]
  %v75 = vld [vmem:[%s1 + $0x1c0] sm:$0xff]
  %v76 = vld [vmem:[%s1 + $0x1c8] sm:$0xff]
  %v77 = vld [vmem:[%s1 + $0x1d0] sm:$0xff]
  %v78 = vld [vmem:[%s1 + $0x1d8] sm:$0xff]
  %v79 = vld [vmem:[%s1 + $0x1e0] sm:$0xff]
  %v80 = vld [vmem:[%s1 + $0x1e8] sm:$0xff]
  %v81 = vld [vmem:[%s1 + $0x1f0] sm:$0xff]
  %v82 = vld [vmem:[%s1 + $0x1f8] sm:$0xff]
  %v83 = vld [vmem:[%s1 + $0x200] sm:$0xff]
  %v84 = vld [vmem:[%s1 + $0x208] sm:$0xff]
  %v85 = vld [vmem:[%s1 + $0x210] sm:$0xff]
  %v86 = vld [vmem:[%s1 + $0x218] sm:$0xff]
  %v87 = vld [vmem:[%s1 + $0x220] sm:$0xff]
  %v88 = vld [vmem:[%s1 + $0x228] sm:$0xff]
  %v89 = vld [vmem:[%s1 + $0x230] sm:$0xff]
  %v90 = vld [vmem:[%s1 + $0x238] sm:$0xff]
  %v91 = vld [vmem:[%s1 + $0x240] sm:$0xff]
  %v92 = vld [vmem:[%s1 + $0x248] sm:$0xff]
  %v93 = vld [vmem:[%s1 + $0x250] sm:$0xff]
  %v94 = vld [vmem:[%s1 + $0x258] sm:$0xff]
  %v95 = vld [vmem:[%s1 + $0x260] sm:$0xff]
  %v96 = vld [vmem:[%s1 + $0x268] sm:$0xff]
  %v97 = vld [vmem:[%s1 + $0x270] sm:$0xff]
  %v98 = vld [vmem:[%s1 + $0x278] sm:$0xff]
  %v99 = vld [vmem:[%s1 + $0x280] sm:$0xff]
  %v100 = vld [vmem:[%s1 + $0x288] sm:$0xff]
  %v101 = vld [vmem:[%s1 + $0x290] sm:$0xff]
  %v102 = vld [vmem:[%s1 + $0x298] sm:$0xff]
  %v104 = vunpack.c.l.b16 %v18
  %v105 = vunpack.c.h.b16 %v18
  %v106 = vpack.c.b16 %v104, %v104
  %v107 = vpack.c.b16 %v105, %v105
  %v193 = vunpack.c.l.b16 %v19
  %v194 = vunpack.c.h.b16 %v19
  %v195 = vunpack.c.l.b16 %v20
  %v196 = vunpack.c.h.b16 %v20
  %v197 = vunpack.c.l.b16 %v21
  %v198 = vunpack.c.h.b16 %v21
  %v199 = vunpack.c.l.b16 %v22
  %v200 = vunpack.c.h.b16 %v22
  %v201 = vunpack.c.l.b16 %v23
  %v202 = vunpack.c.h.b16 %v23
  %v203 = vunpack.c.l.b16 %v24
  %v204 = vunpack.c.h.b16 %v24
  %v205 = vunpack.c.l.b16 %v25
  %v206 = vunpack.c.h.b16 %v25
  %v207 = vunpack.c.l.b16 %v26
  %v208 = vunpack.c.h.b16 %v26
  %v209 = vunpack.c.l.b16 %v27
  %v210 = vunpack.c.h.b16 %v27
  %v211 = vunpack.c.l.b16 %v28
  %v212 = vunpack.c.h.b16 %v28
  %v213 = vunpack.c.l.b16 %v29
  %v214 = vunpack.c.h.b16 %v29
  %v215 = vunpack.c.l.b16 %v30
  %v216 = vunpack.c.h.b16 %v30
  %v217 = vunpack.c.l.b16 %v31
  %v218 = vunpack.c.h.b16 %v31
  %v219 = vunpack.c.l.b16 %v32
  %v220 = vunpack.c.h.b16 %v32
  %v221 = vunpack.c.l.b16 %v33
  %v222 = vunpack.c.h.b16 %v33
  %v223 = vunpack.c.l.b16 %v34
  %v224 = vunpack.c.h.b16 %v34
  %v225 = vunpack.c.l.b16 %v35
  %v226 = vunpack.c.h.b16 %v35
  %v227 = vunpack.c.l.b16 %v36
  %v228 = vunpack.c.h.b16 %v36
  %v229 = vunpack.c.l.b16 %v37
  %v230 = vunpack.c.h.b16 %v37
  %v231 = vunpack.c.l.b16 %v38
  %v232 = vunpack.c.h.b16 %v38
  %v233 = vunpack.c.l.b16 %v39
  %v234 = vunpack.c.h.b16 %v39
  %v235 = vunpack.c.l.b16 %v40
  %v236 = vunpack.c.h.b16 %v40
  %v237 = vunpack.c.l.b16 %v41
  %v238 = vunpack.c.h.b16 %v41
  %v239 = vunpack.c.l.b16 %v42
  %v240 = vunpack.c.h.b16 %v42
  %v241 = vunpack.c.l.b16 %v43
  %v242 = vunpack.c.h.b16 %v43
  %v243 = vunpack.c.l.b16 %v44
  %v244 = vunpack.c.h.b16 %v44
  %v245 = vunpack.c.l.b16 %v45
  %v246 = vunpack.c.h.b16 %v45
  %v247 = vunpack.c.l.b16 %v46
  %v248 = vunpack.c.h.b16 %v46
  %v249 = vunpack.c.l.b16 %v47
  %v250 = vunpack.c.h.b16 %v47
  %v251 = vunpack.c.l.b16 %v48
  %v252 = vunpack.c.h.b16 %v48
  %v253 = vunpack.c.l.b16 %v49
  %v254 = vunpack.c.h.b16 %v49
  %v255 = vunpack.c.l.b16 %v50
  %v256 = vunpack.c.h.b16 %v50
  %v257 = vunpack.c.l.b16 %v51
  %v258 = vunpack.c.h.b16 %v51
  %v259 = vunpack.c.l.b16 %v52
  %v260 = vunpack.c.h.b16 %v52
  %v261 = vunpack.c.l.b16 %v53
  %v262 = vunpack.c.h.b16 %v53
  %v263 = vunpack.c.l.b16 %v54
  %v264 = vunpack.c.h.b16 %v54
  %v265 = vunpack.c.l.b16 %v55
  %v266 = vunpack.c.h.b16 %v55
  %v267 = vunpack.c.l.b16 %v56
  %v268 = vunpack.c.h.b16 %v56
  %v269 = vunpack.c.l.b16 %v57
  %v270 = vunpack.c.h.b16 %v57
  %v271 = vunpack.c.l.b16 %v58
  %v272 = vunpack.c.h.b16 %v58
  %v273 = vunpack.c.l.b16 %v59
  %v274 = vunpack.c.h.b16 %v59
  %v275 = vunpack.c.l.b16 %v60
  %v276 = vunpack.c.h.b16 %v60
  %v277 = vunpack.c.l.b16 %v61
  %v278 = vunpack.c.h.b16 %v61
  %v279 = vunpack.c.l.b16 %v62
  %v280 = vunpack.c.h.b16 %v62
  %v281 = vunpack.c.l.b16 %v63
  %v282 = vunpack.c.h.b16 %v63
  %v283 = vunpack.c.l.b16 %v64
  %v284 = vunpack.c.h.b16 %v64
  %v285 = vunpack.c.l.b16 %v65
  %v286 = vunpack.c.h.b16 %v65
  %v287 = vunpack.c.l.b16 %v66
  %v288 = vunpack.c.h.b16 %v66
  %v289 = vunpack.c.l.b16 %v67
  %v290 = vunpack.c.h.b16 %v67
  %v291 = vunpack.c.l.b16 %v68
  %v292 = vunpack.c.h.b16 %v68
  %v293 = vunpack.c.l.b16 %v69
  %v294 = vunpack.c.h.b16 %v69
  %v295 = vunpack.c.l.b16 %v70
  %v296 = vunpack.c.h.b16 %v70
  %v297 = vunpack.c.l.b16 %v71
  %v298 = vunpack.c.h.b16 %v71
  %v299 = vunpack.c.l.b16 %v72
  %v300 = vunpack.c.h.b16 %v72
  %v301 = vunpack.c.l.b16 %v73
  %v302 = vunpack.c.h.b16 %v73
  %v303 = vunpack.c.l.b16 %v74
  %v304 = vunpack.c.h.b16 %v74
  %v305 = vunpack.c.l.b16 %v75
  %v306 = vunpack.c.h.b16 %v75
  %v307 = vunpack.c.l.b16 %v76
  %v308 = vunpack.c.h.b16 %v76
  %v309 = vunpack.c.l.b16 %v77
  %v310 = vunpack.c.h.b16 %v77
  %v311 = vunpack.c.l.b16 %v78
  %v312 = vunpack.c.h.b16 %v78
  %v313 = vunpack.c.l.b16 %v79
  %v314 = vunpack.c.h.b16 %v79
  %v315 = vunpack.c.l.b16 %v80
  %v316 = vunpack.c.h.b16 %v80
  %v317 = vunpack.c.l.b16 %v81
  %v318 = vunpack.c.h.b16 %v81
  %v319 = vunpack.c.l.b16 %v82
  %v320 = vunpack.c.h.b16 %v82
  %v321 = vunpack.c.l.b16 %v83
  %v322 = vunpack.c.h.b16 %v83
  %v323 = vunpack.c.l.b16 %v84
  %v324 = vunpack.c.h.b16 %v84
  %v325 = vunpack.c.l.b16 %v85
  %v326 = vunpack.c.h.b16 %v85
  %v327 = vunpack.c.l.b16 %v86
  %v328 = vunpack.c.h.b16 %v86
  %v329 = vunpack.c.l.b16 %v87
  %v330 = vunpack.c.h.b16 %v87
  %v331 = vunpack.c.l.b16 %v88
  %v332 = vunpack.c.h.b16 %v88
  %v333 = vunpack.c.l.b16 %v89
  %v334 = vunpack.c.h.b16 %v89
  %v335 = vunpack.c.l.b16 %v90
  %v336 = vunpack.c.h.b16 %v90
  %v337 = vunpack.c.l.b16 %v91
  %v338 = vunpack.c.h.b16 %v91
  %v339 = vunpack.c.l.b16 %v92
  %v340 = vunpack.c.h.b16 %v92
  %v341 = vunpack.c.l.b16 %v93
  %v342 = vunpack.c.h.b16 %v93
  %v343 = vunpack.c.l.b16 %v94
  %v344 = vunpack.c.h.b16 %v94
  %v345 = vunpack.c.l.b16 %v95
  %v346 = vunpack.c.h.b16 %v95
  %v347 = vunpack.c.l.b16 %v96
  %v348 = vunpack.c.h.b16 %v96
  %v349 = vunpack.c.l.b16 %v97
  %v350 = vunpack.c.h.b16 %v97
  %v351 = vunpack.c.l.b16 %v98
  %v352 = vunpack.c.h.b16 %v98
  %v353 = vunpack.c.l.b16 %v99
  %v354 = vunpack.c.h.b16 %v99
  %v355 = vunpack.c.l.b16 %v100
  %v356 = vunpack.c.h.b16 %v100
  %v357 = vunpack.c.l.b16 %v101
  %v358 = vunpack.c.h.b16 %v101
  %v359 = vunpack.c.l.b16 %v102
  %v360 = vunpack.c.h.b16 %v102
  %v361 = vpack.c.b16 %v199, %v193
  %v362 = vpack.c.b16 %v200, %v194
  %v363 = vpack.c.b16 %v201, %v195
  %v364 = vpack.c.b16 %v202, %v196
  %v365 = vpack.c.b16 %v203, %v197
  %v366 = vpack.c.b16 %v204, %v198
  %v367 = vpack.c.b16 %v211, %v205
  %v368 = vpack.c.b16 %v212, %v206
  %v369 = vpack.c.b16 %v213, %v207
  %v370 = vpack.c.b16 %v214, %v208
  %v371 = vpack.c.b16 %v215, %v209
  %v372 = vpack.c.b16 %v216, %v210
  %v373 = vpack.c.b16 %v223, %v217
  %v374 = vpack.c.b16 %v224, %v218
  %v375 = vpack.c.b16 %v225, %v219
  %v376 = vpack.c.b16 %v226, %v220
  %v377 = vpack.c.b16 %v227, %v221
  %v378 = vpack.c.b16 %v228, %v222
  %v379 = vpack.c.b16 %v235, %v229
  %v380 = vpack.c.b16 %v236, %v230
  %v381 = vpack.c.b16 %v237, %v231
  %v382 = vpack.c.b16 %v238, %v232
  %v383 = vpack.c.b16 %v239, %v233
  %v384 = vpack.c.b16 %v240, %v234
  %v385 = vpack.c.b16 %v247, %v241
  %v386 = vpack.c.b16 %v248, %v242
  %v387 = vpack.c.b16 %v249, %v243
  %v388 = vpack.c.b16 %v250, %v244
  %v389 = vpack.c.b16 %v251, %v245
  %v390 = vpack.c.b16 %v252, %v246
  %v391 = vpack.c.b16 %v259, %v253
  %v392 = vpack.c.b16 %v260, %v254
  %v393 = vpack.c.b16 %v261, %v255
  %v394 = vpack.c.b16 %v262, %v256
  %v395 = vpack.c.b16 %v263, %v257
  %v396 = vpack.c.b16 %v264, %v258
  %v397 = vpack.c.b16 %v271, %v265
  %v398 = vpack.c.b16 %v272, %v266
  %v399 = vpack.c.b16 %v273, %v267
  %v400 = vpack.c.b16 %v274, %v268
  %v401 = vpack.c.b16 %v275, %v269
  %v402 = vpack.c.b16 %v276, %v270
  %v403 = vpack.c.b16 %v283, %v277
  %v404 = vpack.c.b16 %v284, %v278
  %v405 = vpack.c.b16 %v285, %v279
  %v406 = vpack.c.b16 %v286, %v280
  %v407 = vpack.c.b16 %v287, %v281
  %v408 = vpack.c.b16 %v288, %v282
  %v409 = vpack.c.b16 %v295, %v289
  %v410 = vpack.c.b16 %v296, %v290
  %v411 = vpack.c.b16 %v297, %v291
  %v412 = vpack.c.b16 %v298, %v292
  %v413 = vpack.c.b16 %v299, %v293
  %v414 = vpack.c.b16 %v300, %v294
  %v415 = vpack.c.b16 %v307, %v301
  %v416 = vpack.c.b16 %v308, %v302
  %v417 = vpack.c.b16 %v309, %v303
  %v418 = vpack.c.b16 %v310, %v304
  %v419 = vpack.c.b16 %v311, %v305
  %v420 = vpack.c.b16 %v312, %v306
  %v421 = vpack.c.b16 %v319, %v313
  %v422 = vpack.c.b16 %v320, %v314
  %v423 = vpack.c.b16 %v321, %v315
  %v424 = vpack.c.b16 %v322, %v316
  %v425 = vpack.c.b16 %v323, %v317
  %v426 = vpack.c.b16 %v324, %v318
  %v427 = vpack.c.b16 %v331, %v325
  %v428 = vpack.c.b16 %v332, %v326
  %v429 = vpack.c.b16 %v333, %v327
  %v430 = vpack.c.b16 %v334, %v328
  %v431 = vpack.c.b16 %v335, %v329
  %v432 = vpack.c.b16 %v336, %v330
  %v433 = vpack.c.b16 %v343, %v337
  %v434 = vpack.c.b16 %v344, %v338
  %v435 = vpack.c.b16 %v345, %v339
  %v436 = vpack.c.b16 %v346, %v340
  %v437 = vpack.c.b16 %v347, %v341
  %v438 = vpack.c.b16 %v348, %v342
  %v439 = vpack.c.b16 %v355, %v349
  %v440 = vpack.c.b16 %v356, %v350
  %v441 = vpack.c.b16 %v357, %v351
  %v442 = vpack.c.b16 %v358, %v352
  %v443 = vpack.c.b16 %v359, %v353
  %v444 = vpack.c.b16 %v360, %v354
  %vm529 = vcmask 785408
  %v531 = vsel %vm529, %v107, 0
  %533 = vmatprep.subr.bf16.mxu0 %v362
  %534 = vmatpush1.bf16.msra.mxu0 %v361
  %535 = vmatprep.subr.bf16.mxu0 %v368
  %536 = vmatpush1.bf16.msra.mxu0 %v367
  %537 = vmatprep.subr.bf16.mxu0 %v374
  %538 = vmatpush1.bf16.msra.mxu0 %v373
  %539 = vmatprep.subr.bf16.mxu0 %v380
  %540 = vmatpush1.bf16.msra.mxu0 %v379
  %541 = vmatprep.subr.bf16.mxu0 %v386
  %542 = vmatpush1.bf16.msra.mxu0 %v385
  %543 = vmatprep.subr.bf16.mxu0 %v392
  %544 = vmatpush1.bf16.msra.mxu0 %v391
  %545 = vmatprep.subr.bf16.mxu0 %v398
  %546 = vmatpush1.bf16.msra.mxu0 %v397
  %547 = vmatprep.subr.bf16.mxu0 %v404
  %548 = vmatpush1.bf16.msra.mxu0 %v403
  %549 = vmatprep.subr.bf16.mxu0 %v410
  %550 = vmatpush1.bf16.msra.mxu0 %v409
  %551 = vmatprep.subr.bf16.mxu0 %v416
  %552 = vmatpush1.bf16.msra.mxu0 %v415
  %553 = vmatprep.subr.bf16.mxu0 %v422
  %554 = vmatpush1.bf16.msra.mxu0 %v421
  %555 = vmatprep.subr.bf16.mxu0 %v428
  %556 = vmatpush1.bf16.msra.mxu0 %v427
  %557 = vmatprep.subr.bf16.mxu0 %v434
  %558 = vmatpush1.bf16.msra.mxu0 %v433
  %559 = vmatprep.subr.bf16.mxu0 %v440
  %560 = vmatpush1.bf16.msra.mxu0 %v439
  %561 = vmatprep.subr.bf16.mxu0 0
  %562 = vmatpush1.bf16.msra.mxu0 0
  %563 = vmatprep.subr.bf16.mxu0 0
  %564 = vmatpush1.bf16.msra.mxu0 0
  %565 = vmatprep.mubr.bf16.mxu0 %v531
  %566 = vmatmul.mubr.bf16.gmra.mrb[0].mxu0 %v106
  %v567 = vpop.f32.mrb[0].mxu0
  %v568 = vadd.f32 0.0, %v567
  %v569 = vpop.f32.mrb[0].mxu0
  %v570 = vadd.f32 0.0, %v569
  %v571 = vpop.f32.mrb[0].mxu0
  %v572 = vpop.f32.mrb[0].mxu0
  %573 = vdwg.mxu0
  %574 = vmatprep.subr.bf16.mxu0 %v364
  %575 = vmatpush1.bf16.msra.mxu0 %v363
  %576 = vmatprep.subr.bf16.mxu0 %v370
  %577 = vmatpush1.bf16.msra.mxu0 %v369
  %578 = vmatprep.subr.bf16.mxu0 %v376
  %579 = vmatpush1.bf16.msra.mxu0 %v375
  %580 = vmatprep.subr.bf16.mxu0 %v382
  %581 = vmatpush1.bf16.msra.mxu0 %v381
  %582 = vmatprep.subr.bf16.mxu0 %v388
  %583 = vmatpush1.bf16.msra.mxu0 %v387
  %584 = vmatprep.subr.bf16.mxu0 %v394
  %585 = vmatpush1.bf16.msra.mxu0 %v393
  %586 = vmatprep.subr.bf16.mxu0 %v400
  %587 = vmatpush1.bf16.msra.mxu0 %v399
  %588 = vmatprep.subr.bf16.mxu0 %v406
  %589 = vmatpush1.bf16.msra.mxu0 %v405
  %590 = vmatprep.subr.bf16.mxu0 %v412
  %591 = vmatpush1.bf16.msra.mxu0 %v411
  %592 = vmatprep.subr.bf16.mxu0 %v418
  %593 = vmatpush1.bf16.msra.mxu0 %v417
  %594 = vmatprep.subr.bf16.mxu0 %v424
  %595 = vmatpush1.bf16.msra.mxu0 %v423
  %596 = vmatprep.subr.bf16.mxu0 %v430
  %597 = vmatpush1.bf16.msra.mxu0 %v429
  %598 = vmatprep.subr.bf16.mxu0 %v436
  %599 = vmatpush1.bf16.msra.mxu0 %v435
  %600 = vmatprep.subr.bf16.mxu0 %v442
  %601 = vmatpush1.bf16.msra.mxu0 %v441
  %602 = vmatprep.subr.bf16.mxu0 0
  %603 = vmatpush1.bf16.msra.mxu0 0
  %604 = vmatprep.subr.bf16.mxu0 0
  %605 = vmatpush1.bf16.msra.mxu0 0
  %606 = vmatprep.mubr.bf16.mxu0 %v531
  %607 = vmatmul.mubr.bf16.gmra.mrb[0].mxu0 %v106
  %v608 = vpop.f32.mrb[0].mxu0
  %v609 = vadd.f32 0.0, %v608
  %v610 = vpop.f32.mrb[0].mxu0
  %v611 = vadd.f32 0.0, %v610
  %v612 = vpop.f32.mrb[0].mxu0
  %v613 = vpop.f32.mrb[0].mxu0
  %614 = vdwg.mxu0
  %615 = vmatprep.subr.bf16.mxu0 %v366
  %616 = vmatpush1.bf16.msra.mxu0 %v365
  %617 = vmatprep.subr.bf16.mxu0 %v372
  %618 = vmatpush1.bf16.msra.mxu0 %v371
  %619 = vmatprep.subr.bf16.mxu0 %v378
  %620 = vmatpush1.bf16.msra.mxu0 %v377
  %621 = vmatprep.subr.bf16.mxu0 %v384
  %622 = vmatpush1.bf16.msra.mxu0 %v383
  %623 = vmatprep.subr.bf16.mxu0 %v390
  %624 = vmatpush1.bf16.msra.mxu0 %v389
  %625 = vmatprep.subr.bf16.mxu0 %v396
  %626 = vmatpush1.bf16.msra.mxu0 %v395
  %627 = vmatprep.subr.bf16.mxu0 %v402
  %628 = vmatpush1.bf16.msra.mxu0 %v401
  %629 = vmatprep.subr.bf16.mxu0 %v408
  %630 = vmatpush1.bf16.msra.mxu0 %v407
  %631 = vmatprep.subr.bf16.mxu0 %v414
  %632 = vmatpush1.bf16.msra.mxu0 %v413
  %633 = vmatprep.subr.bf16.mxu0 %v420
  %634 = vmatpush1.bf16.msra.mxu0 %v419
  %635 = vmatprep.subr.bf16.mxu0 %v426
  %636 = vmatpush1.bf16.msra.mxu0 %v425
  %637 = vmatprep.subr.bf16.mxu0 %v432
  %638 = vmatpush1.bf16.msra.mxu0 %v431
  %639 = vmatprep.subr.bf16.mxu0 %v438
  %640 = vmatpush1.bf16.msra.mxu0 %v437
  %641 = vmatprep.subr.bf16.mxu0 %v444
  %642 = vmatpush1.bf16.msra.mxu0 %v443
  %643 = vmatprep.subr.bf16.mxu0 0
  %644 = vmatpush1.bf16.msra.mxu0 0
  %645 = vmatprep.subr.bf16.mxu0 0
  %646 = vmatpush1.bf16.msra.mxu0 0
  %647 = vmatprep.mubr.bf16.mxu0 %v531
  %648 = vmatmul.mubr.bf16.gmra.mrb[0].mxu0 %v106
  %v649 = vpop.f32.mrb[0].mxu0
  %v650 = vadd.f32 0.0, %v649
  %v651 = vpop.f32.mrb[0].mxu0
  %v652 = vadd.f32 0.0, %v651
  %v653 = vpop.f32.mrb[0].mxu0
  %v654 = vpop.f32.mrb[0].mxu0
  %655 = vdwg.mxu0
  %v656 = vld [vmem:[%s2] sm:$0xff]
  %v657 = vld [vmem:[%s2 + $0x8] sm:$0xff]
  %v658 = vld [vmem:[%s2 + $0x10] sm:$0xff]
  %v659 = vld [vmem:[%s2 + $0x18] sm:$0xff]
  %v660 = vld [vmem:[%s3] sm:$0xff]
  %v661 = vld [vmem:[%s3 + $0x8] sm:$0xff]
  %v662 = vld [vmem:[%s3 + $0x10] sm:$0xff]
  %v663 = vld [vmem:[%s3 + $0x18] sm:$0xff]
  %v664 = vld [vmem:[%s3 + $0x20] sm:$0xff]
  %v665 = vld [vmem:[%s3 + $0x28] sm:$0xff]
  %v666 = vld [vmem:[%s3 + $0x30] sm:$0xff]
  %v667 = vld [vmem:[%s3 + $0x38] sm:$0xff]
  %vm668 = vcmask 261120
  %v670 = vsel %vm668, %v656, 0
  %v673 = vsel %vm668, %v657, 0
  %v676 = vsel %vm668, %v658, 0
  %v679 = vsel %vm668, %v659, 0
  %681 = vmatprep.subr.mxu0 %v661
  %682 = vmatpush1.msra.mxu0 %v660
  %683 = vmatprep.subr.mxu0 %v663
  %684 = vmatpush1.msra.mxu0 %v662
  %685 = vmatprep.subr.mxu0 %v665
  %686 = vmatpush1.msra.mxu0 %v664
  %687 = vmatprep.subr.mxu0 %v667
  %688 = vmatpush1.msra.mxu0 %v666
  %689 = vmatprep.subr.mxu0 0.0
  %690 = vmatpush1.msra.mxu0 0.0
  %691 = vmatprep.subr.mxu0 0.0
  %692 = vmatpush1.msra.mxu0 0.0
  %693 = vmatprep.subr.mxu0 0.0
  %694 = vmatpush1.msra.mxu0 0.0
  %695 = vmatprep.subr.mxu0 0.0
  %696 = vmatpush1.msra.mxu0 0.0
  %697 = vmatprep.subr.mxu0 0.0
  %698 = vmatpush1.msra.mxu0 0.0
  %699 = vmatprep.subr.mxu0 0.0
  %700 = vmatpush1.msra.mxu0 0.0
  %701 = vmatprep.subr.mxu0 0.0
  %702 = vmatpush1.msra.mxu0 0.0
  %703 = vmatprep.subr.mxu0 0.0
  %704 = vmatpush1.msra.mxu0 0.0
  %705 = vmatprep.subr.mxu0 0.0
  %706 = vmatpush1.msra.mxu0 0.0
  %707 = vmatprep.subr.mxu0 0.0
  %708 = vmatpush1.msra.mxu0 0.0
  %709 = vmatprep.subr.mxu0 0.0
  %710 = vmatpush1.msra.mxu0 0.0
  %711 = vmatprep.subr.mxu0 0.0
  %712 = vmatpush1.msra.mxu0 0.0
  %713 = vmatprep.subr.mxu0 0.0
  %714 = vmatpush1.msra.mxu0 0.0
  %715 = vmatprep.subr.mxu0 0.0
  %716 = vmatpush1.msra.mxu0 0.0
  %717 = vmatprep.subr.mxu0 0.0
  %718 = vmatpush1.msra.mxu0 0.0
  %719 = vmatprep.subr.mxu0 0.0
  %720 = vmatpush1.msra.mxu0 0.0
  %721 = vmatprep.subr.mxu0 0.0
  %722 = vmatpush1.msra.mxu0 0.0
  %723 = vmatprep.subr.mxu0 0.0
  %724 = vmatpush1.msra.mxu0 0.0
  %725 = vmatprep.subr.mxu0 0.0
  %726 = vmatpush1.msra.mxu0 0.0
  %727 = vmatprep.subr.mxu0 0.0
  %728 = vmatpush1.msra.mxu0 0.0
  %729 = vmatprep.subr.mxu0 0.0
  %730 = vmatpush1.msra.mxu0 0.0
  %731 = vmatprep.subr.mxu0 0.0
  %732 = vmatpush1.msra.mxu0 0.0
  %733 = vmatprep.subr.mxu0 0.0
  %734 = vmatpush1.msra.mxu0 0.0
  %735 = vmatprep.subr.mxu0 0.0
  %736 = vmatpush1.msra.mxu0 0.0
  %737 = vmatprep.subr.mxu0 0.0
  %738 = vmatpush1.msra.mxu0 0.0
  %739 = vmatprep.subr.mxu0 0.0
  %740 = vmatpush1.msra.mxu0 0.0
  %741 = vmatprep.subr.mxu0 0.0
  %742 = vmatpush1.msra.mxu0 0.0
  %743 = vmatprep.subr.mxu0 0.0
  %744 = vmatpush1.msra.mxu0 0.0
  %745 = vmatprep.mubr.f32.mxu0 0.0
  %746 = vmatmul.mubr.f32.gmra.mrb[0].mxu0 %v670
  %v747 = vpop.f32.mrb[0].mxu0
  %v748 = vadd.f32 0.0, %v747
  %v749 = vpop.f32.mrb[0].mxu0
  %v750 = vadd.f32 0.0, %v749
  %751 = vmatprep.mubr.f32.mxu0 0.0
  %752 = vmatmul.mubr.f32.gmra.mrb[0].mxu0 %v673
  %v753 = vpop.f32.mrb[0].mxu0
  %v754 = vadd.f32 0.0, %v753
  %v755 = vpop.f32.mrb[0].mxu0
  %v756 = vadd.f32 0.0, %v755
  %757 = vmatprep.mubr.f32.mxu0 0.0
  %758 = vmatmul.mubr.f32.gmra.mrb[0].mxu0 %v676
  %v759 = vpop.f32.mrb[0].mxu0
  %v760 = vadd.f32 0.0, %v759
  %v761 = vpop.f32.mrb[0].mxu0
  %v762 = vadd.f32 0.0, %v761
  %763 = vmatprep.mubr.f32.mxu0 0.0
  %764 = vmatmul.mubr.f32.gmra.mrb[0].mxu0 %v679
  %v765 = vpop.f32.mrb[0].mxu0
  %v766 = vadd.f32 0.0, %v765
  %v767 = vpop.f32.mrb[0].mxu0
  %v768 = vadd.f32 0.0, %v767
  %769 = vdwg.mxu0
  %v770 = vmul.f32 %v748, %v568
  %v771 = vmul.f32 %v750, %v570
  %v772 = vmul.f32 %v754, %v609
  %v773 = vmul.f32 %v756, %v611
  %v774 = vadd.f32 %v770, %v772
  %v775 = vadd.f32 %v771, %v773
  %v776 = vmul.f32 %v760, %v650
  %v777 = vmul.f32 %v762, %v652
  %v778 = vadd.f32 %v774, %v776
  %v779 = vadd.f32 %v775, %v777
  %v780 = vadd.f32 %v778, %v766
  %v781 = vadd.f32 %v779, %v768
  %782 = vst [vmem:[%s4] sm:$0xff] %v780
  %783 = vst [vmem:[%s4 + $0x8] sm:$0xff] %v781
  // Predicated region
  $region18: #{run.1} parent=0 // pred_check
    _
  $region19: #{run.1} parent=0 // pred_check_branch
    %785 = sbr.rel (0) target = $region21
  $region20: #{run.1} parent=0 // pred_region
    _
  $region21: #{run.1} parent=0 // pred_fallthru
    _
  // Predicated region
  $region22: #{run.1} parent=0 // pred_check
    _
  $region23: #{run.1} parent=0 // pred_check_branch
    %787 = sbr.rel (0) target = $region25
  $region24: #{run.1} parent=0 // pred_region
    _
  $region25: #{run.1} parent=0 // pred_fallthru
    _

</llo_original>
